<compile_context>
chip_gen: v6e
topology: v6e:2x2x1
jax: 0.10.0
libtpu: 0.0.40
codegen_flags: <defaults>
</compile_context>

<pallas_src>
import jax
import jax.numpy as jnp
from jax import lax
from jax.experimental import pallas as pl
from jax.experimental.pallas import tpu as pltpu

_LANE = 128
_SUBLANE = 8
_MAX_TOKENS_PER_CALL = 32768   # keeps the scalar-prefetched index array well inside SMEM
_TOKEN_BLOCK = 512             # tokens gathered per grid step (multiple of 8)
_NUM_INFLIGHT = 8              # concurrent row DMAs in the HBM-gather path


def _round_up(x: int, m: int) -> int:
    return ((x + m - 1) // m) * m


def _vmem_capacity_bytes() -> int:
    """Physical VMEM per TensorCore; conservative fallback if the query fails."""
    try:
        cap = int(getattr(pltpu.get_tpu_info(), "vmem_capacity_bytes"))
        if cap > 0:
            return cap
    except Exception:
        pass
    return 64 * 1024 * 1024  # v7x per-core VMEM (smallest of the supported gens)


# --------------------------------------------------------------------------- #
# Kernels
# --------------------------------------------------------------------------- #
def _embed_resident_kernel(idx_ref, w_ref, out_ref):
    """Gather rows of a VMEM-resident table into one (T, E_pad) output block.

    idx_ref: SMEM-prefetched flat token ids (whole chunk).
    w_ref:   (V_pad, E_pad) table, resident in VMEM (constant index_map).
    out_ref: (T, E_pad) output block for this grid step.
    """
    tokens = out_ref.shape[0]
    base = pl.program_id(0) * tokens

    def copy_row(t, carry):
        row = idx_ref[base + t]
        out_ref[pl.ds(t, 1), :] = w_ref[pl.ds(row, 1), :]
        return carry

    lax.fori_loop(0, tokens, copy_row, 0)


def _embed_hbm_kernel(idx_ref, w_hbm, out_ref, row_buf, sems):
    """Gather rows straight from an HBM table with a ring of in-flight row DMAs.

    idx_ref: SMEM-prefetched flat token ids (whole chunk).
    w_hbm:   (V_pad, E_pad) table left in HBM (memory_space=pl.ANY).
    out_ref: (T, E_pad) output block for this grid step.
    row_buf: (T, E_pad) VMEM scratch the row DMAs land in.
    sems:    DMA semaphore ring of size _NUM_INFLIGHT.
    """
    tokens = out_ref.shape[0]
    base = pl.program_id(0) * tokens
    k = _NUM_INFLIGHT

    def start_row(t):
        row = idx_ref[base + t]
        pltpu.make_async_copy(w_hbm.at[row], row_buf.at[t], sems.at[t % k]).start()

    def wait_row(t):
        # Descriptor only needs matching shapes for the byte count; src index is
        # irrelevant for the wait.
        pltpu.make_async_copy(w_hbm.at[0], row_buf.at[t], sems.at[t % k]).wait()

    # Prime the pipeline with the first min(k, tokens) fetches.
    def prime(t, carry):
        start_row(t)
        return carry

    lax.fori_loop(0, min(k, tokens), prime, 0)

    # Steady state: wait for row t, immediately launch row t + k (reuses sem t % k).
    def step(t, carry):
        wait_row(t)

        @pl.when(t + k < tokens)
        def _():
            start_row(t + k)

        return carry

    lax.fori_loop(0, tokens, step, 0)

    # Single lane/sublane-dense write of the whole block.
    out_ref[...] = row_buf[...]


# --------------------------------------------------------------------------- #
# Wrapper
# --------------------------------------------------------------------------- #
def _embed_chunk(W_pad, idx_pad, *, tokens_per_block, use_resident, vmem_limit):
    n_pad = idx_pad.shape[0]
    v_pad, e_pad = W_pad.shape
    grid = (n_pad // tokens_per_block,)
    out_shape = jax.ShapeDtypeStruct((n_pad, e_pad), W_pad.dtype)
    out_spec = pl.BlockSpec((tokens_per_block, e_pad), lambda i, idx: (i, 0))

    if use_resident:
        grid_spec = pltpu.PrefetchScalarGridSpec(
            num_scalar_prefetch=1,
            grid=grid,
            # Whole table as one block with a constant index_map -> loaded once,
            # stays resident across grid steps.
            in_specs=[pl.BlockSpec((v_pad, e_pad), lambda i, idx: (0, 0))],
            out_specs=out_spec,
        )
        kernel = _embed_resident_kernel
        compiler_params = pltpu.CompilerParams(
            dimension_semantics=("parallel",),
            vmem_limit_bytes=int(vmem_limit),
        )
    else:
        grid_spec = pltpu.PrefetchScalarGridSpec(
            num_scalar_prefetch=1,
            grid=grid,
            in_specs=[pl.BlockSpec(memory_space=pl.ANY)],  # raw HBM ref, manual DMA
            out_specs=out_spec,
            scratch_shapes=[
                pltpu.VMEM((tokens_per_block, e_pad), W_pad.dtype),
                pltpu.SemaphoreType.DMA((_NUM_INFLIGHT,)),
            ],
        )
        kernel = _embed_hbm_kernel
        compiler_params = pltpu.CompilerParams(
            dimension_semantics=("parallel",),
        )

    return pl.pallas_call(
        kernel,
        out_shape=out_shape,
        grid_spec=grid_spec,
        compiler_params=compiler_params,
    )(idx_pad, W_pad)


def embed_forward(W: jax.Array, x: jax.Array, *, force_hbm_gather: bool = False) -> jax.Array:
    """Pallas equivalent of `W[x]` (torch embedding lookup).

    W: (vocab_size, embed_size) table (any float dtype; output keeps W.dtype)
    x: integer array of arbitrary shape, values in [0, vocab_size)
    returns: x.shape + (embed_size,)
    """
    vocab_size, embed_size = W.shape
    x_flat = x.reshape(-1).astype(jnp.int32)
    # torch raises on out-of-range ids; clamp here so a bad id can never drive an
    # out-of-bounds row DMA.  In-range inputs are unaffected.
    x_flat = jnp.clip(x_flat, 0, vocab_size - 1)
    n = x_flat.shape[0]

    # Pad the table so the last two dims are lane/sublane aligned.
    e_pad = _round_up(embed_size, _LANE)
    v_pad = _round_up(vocab_size, _SUBLANE)
    W_pad = W
    if (v_pad, e_pad) != (vocab_size, embed_size):
        W_pad = jnp.pad(W, ((0, v_pad - vocab_size), (0, e_pad - embed_size)))

    itemsize = jnp.dtype(W_pad.dtype).itemsize
    table_bytes = v_pad * e_pad * itemsize

    tokens_per_block = min(_TOKEN_BLOCK, _round_up(max(min(n, _MAX_TOKENS_PER_CALL), 1), _SUBLANE))
    out_block_bytes = tokens_per_block * e_pad * itemsize

    # Resident-table fast path only if (double-buffered) table + double-buffered
    # output blocks comfortably fit the chip's VMEM (64 MiB/TC on v7x, 128 MiB on
    # v5e/v6e); otherwise fall back to the blocked HBM-gather path.
    vmem_cap = _vmem_capacity_bytes()
    resident_need = 2 * table_bytes + 2 * out_block_bytes + (2 << 20)
    use_resident = (not force_hbm_gather) and resident_need <= int(0.75 * vmem_cap)
    vmem_limit = min(resident_need + (8 << 20), int(0.9 * vmem_cap)) if use_resident else None

    outs = []
    start = 0
    while start < n:
        chunk = x_flat[start:start + _MAX_TOKENS_PER_CALL]
        cn = chunk.shape[0]
        t_blk = min(tokens_per_block, _round_up(cn, _SUBLANE))
        n_pad = _round_up(cn, t_blk)
        idx_pad = jnp.pad(chunk, (0, n_pad - cn))  # padded slots look up row 0, sliced off below
        out_pad = _embed_chunk(
            W_pad, idx_pad,
            tokens_per_block=t_blk,
            use_resident=use_resident,
            vmem_limit=vmem_limit,
        )
        outs.append(out_pad[:cn, :embed_size])
        start += _MAX_TOKENS_PER_CALL

    out_flat = outs[0] if len(outs) == 1 else jnp.concatenate(outs, axis=0)
    return out_flat.reshape(x.shape + (embed_size,))


if __name__ == "__main__":
    vocab_size = 64
    embed_size = 128
    batch, seq = 2, 8

    key = jax.random.PRNGKey(0)
    k_w, k_x = jax.random.split(key)

    # Deterministic parameter init (nn.Parameter(torch.Tensor(V, E)) is uninitialized
    # in torch; we use a normal init as a concrete deterministic choice).
    W = jax.random.normal(k_w, (vocab_size, embed_size), dtype=jnp.float32)
    x = jax.random.randint(k_x, (batch, seq), 0, vocab_size, dtype=jnp.int32)
    ref = W[x]

    # Fast path: table resident in VMEM.
    out = jax.block_until_ready(embed_forward(W, x))
    assert out.shape == (batch, seq, embed_size)
    assert jnp.array_equal(out, ref)

    # Large-table path: blocked manual-DMA gather straight from HBM.
    out_hbm = jax.block_until_ready(embed_forward(W, x, force_hbm_gather=True))
    assert jnp.array_equal(out_hbm, ref)

    # Non-multiple-of-128 embedding width exercises the padding logic.
    W2 = jax.random.normal(k_w, (vocab_size, 96), dtype=jnp.float32)
    out2 = jax.block_until_ready(embed_forward(W2, x))
    assert jnp.array_equal(out2, W2[x])

    print("KERNEL_OK")
</pallas_src>

<mosaic_0001>
module attributes {stable_mosaic.version = 11 : i64} {
  func.func @_embed_resident_kernel(%arg0: i32, %arg1: memref<16xi32, #tpu.memory_space<smem>>, %arg2: memref<64x128xf32, #tpu.memory_space<vmem>>, %arg3: memref<16x128xf32, #tpu.memory_space<vmem>>) attributes {dimension_semantics = [#tpu.dimension_semantics<parallel>], iteration_bounds = array<i64: 1>, scalar_prefetch = 1 : i64, scratch_operands = 0 : i64, tpu.core_type = #tpu.core_type<tc>, window_params = [{pipeline_mode = #tpu.pipeline_mode<synchronous>, transform_indices = @transform_0, window_bounds = array<i64: 64, 128>}, {transform_indices = @transform_1, window_bounds = array<i64: 16, 128>}]} {
    %c16_i32 = arith.constant 16 : i32
    %0 = arith.muli %arg0, %c16_i32 : i32
    %c0_i32 = arith.constant 0 : i32
    %c16_i32_0 = arith.constant 16 : i32
    %1 = arith.addi %c0_i32, %c16_i32_0 : i32
    %c1_i32 = arith.constant 1 : i32
    scf.for %arg4 = %c0_i32 to %1 step %c1_i32  : i32 {
      %2 = arith.addi %0, %arg4 : i32
      %3 = arith.index_cast %2 : i32 to index
      %4 = memref.load %arg1[%3] : memref<16xi32, #tpu.memory_space<smem>>
      %5 = arith.index_cast %4 : i32 to index
      %c0 = arith.constant 0 : index
      %6 = vector.load %arg2[%5, %c0] : memref<64x128xf32, #tpu.memory_space<vmem>>, vector<1x128xf32>
      %7 = arith.index_cast %arg4 : i32 to index
      %c0_2 = arith.constant 0 : index
      %8 = vector.load %arg3[%7, %c0_2] : memref<16x128xf32, #tpu.memory_space<vmem>>, vector<1x128xf32>
      tpu.vector_store %arg3[%7, %c0_2], %6 {strides = array<i32>} : memref<16x128xf32, #tpu.memory_space<vmem>>, vector<1x128xf32>,
    }
    %c16_i32_1 = arith.constant 16 : i32
    return
  }
  func.func @transform_0(%arg0: i32, %arg1: memref<16xi32, #tpu.memory_space<smem>>) -> (i32, i32) {
    %c0_i32 = arith.constant 0 : i32
    %c0_i32_0 = arith.constant 0 : i32
    %c0_i32_1 = arith.constant 0 : i32
    return %c0_i32, %c0_i32_0 : i32, i32
  }
  func.func @transform_1(%arg0: i32, %arg1: memref<16xi32, #tpu.memory_space<smem>>) -> (i32, i32) {
    %c0_i32 = arith.constant 0 : i32
    %c0_i32_0 = arith.constant 0 : i32
    return %arg0, %c0_i32 : i32, i32
  }
}

</mosaic_0001>

<llo_original>
// kernel: tpu_custom_call.1
$region0: #{tpu_custom_call.1}
  #allocation0 [shape = 'u32[]', space=smem, size = 0x4, offset = 0x4, fixed_abs, tag = 'smem constant byte address 0x4 - core index']
  #allocation1 [shape = 'u32[144,128]{1,0:T(1,128)}', space=vmem, size = 0x12000, scoped, tag = 'internal scratch']
  #allocation2 [shape = 's32[1]{0}', space=sflag, size = 0x4, scoped, tag = 'scoped memory for tpu_custom_call.1']
  #allocation3 [shape = 'u8[512]{0}', space=smem, size = 0x200, scoped, tag = 'prefetched SMEM operand 0']
  %s0 = inlined_call_operand.hbm [shape: s32[16], index: 0, kind: input, shape index: {}]
  %s1 = inlined_call_operand.hbm [shape: f32[64,128], index: 1, kind: input, shape index: {}]
  %s2 = inlined_call_operand.hbm [shape: f32[16,128], index: 2, kind: output, shape index: {}]
  %s3 = sld [smem:[#allocation0]]
  $region25: #{tpu_custom_call.1} parent=0
    _
  %s5 = ssub.s32 1, %s3
  %s6 = scalar_select 0, %s5, %s3
  %8 = dma.hbm_to_smem %s0, 16, [#allocation3], [#allocation2]
  %9 = dma.done [#allocation2], 16
  %10 = sfence
  $region1: #{tpu_custom_call.1} parent=0
    #allocation4 [shape = 'u8[32768]{0}', space=vmem, size = 0x8000, scoped, tag = 'input window, operand 1, single buffered']
    #allocation5 [shape = 's32[1]{0}', space=sflag, size = 0x4, scoped, tag = 'scoped memory for tpu_custom_call.1']
    #allocation6 [shape = 's32[1]{0}', space=sflag, size = 0x4, scoped, tag = 'scoped memory for tpu_custom_call.1']
    #allocation7 [shape = 'u8[8192]{0}', space=vmem, size = 0x2000, scoped, tag = 'output window, operand 0, single buffered']
    %11 = vsyncpa [#allocation5], 0
    %12 = vsyncpa [#allocation6], 0
    // Predicated region
    $region2: #{tpu_custom_call.1} parent=1 // pred_check
      _
    $region3: #{tpu_custom_call.1} parent=1 // pred_check_branch
      %14 = sbr.rel (0) target = $region5
    $region4: #{tpu_custom_call.1} parent=1 // pred_region
      %s16 = ssub.s32 1024, 1024
      %17 = vsyncadd [#allocation5], %s16
      %s18 = sshll.u32 [#allocation4], 4
      %s19 = int_to_ptr.vmem [resolvable:$true] %s18
      %24 = dma.hbm_to_vmem [thread:$0]  %s1, 1024, %s19, [#allocation5], 128, 128, 8
    $region5: #{tpu_custom_call.1} parent=1 // pred_fallthru
      _
    // Predicated region
    $region6: #{tpu_custom_call.1} parent=1 // pred_check
      _
    $region7: #{tpu_custom_call.1} parent=1 // pred_check_branch
      %26 = sbr.rel (0) target = $region9
    $region8: #{tpu_custom_call.1} parent=1 // pred_region
      %27 = dma.done [#allocation5], 1024
    $region9: #{tpu_custom_call.1} parent=1 // pred_fallthru
      _
    %s28 = smul.u32 0, 16
    loop: start=0, step=1, limit=16
    $region10: #{tpu_custom_call.1} parent=1 // loop_pre_header
      _
    $region11: #{tpu_custom_call.1} parent=1 // loop_header
      %s30 = sphi 0, %s34
      %p31 = scmp.ge.s32.totalorder %s30, 16
    $region12: #{tpu_custom_call.1} parent=1 // loop_header_branch
      %33 = sbr.rel (%p31) target = $region16
    $region13: #{tpu_custom_call.1} parent=1 // loop_body
      %s35 = sadd.s32 %s28, %s30
      %s36 = sld [smem:[#allocation3 + %s35]]
      %s37 = scalar_lea.vmem [#allocation4], %s36
      %v38 = vld [vmem:[%s37] sm:$0x1]
      %s39 = scalar_lea.vmem [#allocation7], %s30
      %40 = vst [vmem:[%s39] sm:$0x1] %v38
    $region14: #{tpu_custom_call.1} parent=1 // loop_footer
      %s34 = sadd.s32 1, %s30
    $region15: #{tpu_custom_call.1} parent=1 // loop_footer_branch
      %29 = sbr.rel target = $region11
    $region16: #{tpu_custom_call.1} parent=1 // loop_exit
      _
    // Predicated region
    $region17: #{tpu_custom_call.1} parent=1 // pred_check
      _
    $region18: #{tpu_custom_call.1} parent=1 // pred_check_branch
      %42 = sbr.rel (0) target = $region20
    $region19: #{tpu_custom_call.1} parent=1 // pred_region
      %s44 = ssub.s32 256, 256
      %45 = vsyncadd [#allocation6], %s44
      %s46 = sshll.u32 [#allocation7], 4
      %s47 = int_to_ptr.vmem [resolvable:$true] %s46
      %52 = dma.vmem_to_hbm [thread:$0]  %s47, 256, %s2, [#allocation6], 128, 128, 8
    $region20: #{tpu_custom_call.1} parent=1 // pred_fallthru
      _
    // Predicated region
    $region21: #{tpu_custom_call.1} parent=1 // pred_check
      _
    $region22: #{tpu_custom_call.1} parent=1 // pred_check_branch
      %54 = sbr.rel (0) target = $region24
    $region23: #{tpu_custom_call.1} parent=1 // pred_region
      %55 = dma.done [#allocation6], 256
    $region24: #{tpu_custom_call.1} parent=1 // pred_fallthru
      _
    %56 = vsyncpa [#allocation5], 1
    %57 = vsyncpa [#allocation6], 1

</llo_original>
